<compile_context>
chip_gen: v5e
topology: v5e:2x2
jax: 0.10.0
libtpu: 0.0.40
codegen_flags: <defaults>
</compile_context>

<pallas_src>
import functools

import jax
import jax.numpy as jnp
from jax.experimental import pallas as pl
from jax.experimental.pallas import tpu as pltpu


# ----------------------------- config ---------------------------------------
class Config:
    d_hidn = 32
    n_head = 4
    d_head = 8
    n_enc_seq = 8
    dropout = 0.0   # dropout is identity in this kernel (inference / p = 0.0)


# ----------------------------- kernel ----------------------------------------
def sdpa_kernel(q_ref, k_ref, v_ref, mask_ref, ctx_ref, attn_ref, *, scale):
    """Scaled dot-product attention over all (batch*head) slices at once.

    q/k/v: (BH, S, Dh) f32;  mask: (BH, S, S) i32 (nonzero == masked key).
    Outputs: ctx (BH, S, Dh), attn (BH, S, S).
    """
    # Fold the 1/sqrt(d_hidn) scale into Q (one multiply, done once).
    q = q_ref[...] * jnp.float32(scale)
    k = k_ref[...]
    v = v_ref[...]
    masked = mask_ref[...] != 0                     # hoisted bool mask

    # scores[b] = q[b] @ k[b]^T : single batched MXU contraction over all heads.
    scores = jnp.einsum("bqd,bkd->bqk", q, k,
                        preferred_element_type=jnp.float32)   # (BH, S, S)
    scores = jnp.where(masked, jnp.float32(-1e9), scores)

    # Numerically-stable softmax over keys; divide goes to the EUP.
    m = jnp.max(scores, axis=-1, keepdims=True)
    e = jnp.exp(scores - m)
    p = e * pl.reciprocal(jnp.sum(e, axis=-1, keepdims=True), approx=True)

    attn_ref[...] = p                               # dropout(p=0.0) == identity

    # context[b] = p[b] @ v[b] : second batched MXU contraction.
    ctx_ref[...] = jnp.einsum("bqk,bkd->bqd", p, v,
                              preferred_element_type=jnp.float32)


# ----------------------------- wrapper ---------------------------------------
def _full_spec(shape):
    nd = len(shape)
    return pl.BlockSpec(shape, lambda *_: (0,) * nd)


def scaled_dot_product_attention(Q, K, V, attn_mask, cfg):
    """Pallas equivalent of ScaledDotProductAttention.forward.

    Q, K, V:   (B, H, S, Dh) float32
    attn_mask: (B, H, S, S)  bool/int, True/nonzero where the key is masked
    Returns (context (B, H, S, Dh), attn_prob (B, H, S, S)).
    """
    B, H, S, Dh = Q.shape
    BH = B * H
    scale = 1.0 / (cfg.d_hidn ** 0.5)   # module uses d_hidn, not d_head

    # Flatten (B, H) into one batch axis in the wrapper (free reshapes), so the
    # kernel sees lane/sublane-friendly 3-D slabs and does batched matmuls.
    qf = Q.reshape(BH, S, Dh).astype(jnp.float32)
    kf = K.reshape(BH, S, Dh).astype(jnp.float32)
    vf = V.reshape(BH, S, Dh).astype(jnp.float32)
    mf = attn_mask.reshape(BH, S, S).astype(jnp.int32)

    kernel = functools.partial(sdpa_kernel, scale=scale)

    ctx, prob = pl.pallas_call(
        kernel,
        grid=(1,),                      # everything fits trivially in VMEM
        in_specs=[_full_spec(qf.shape), _full_spec(kf.shape),
                  _full_spec(vf.shape), _full_spec(mf.shape)],
        out_specs=(_full_spec((BH, S, Dh)), _full_spec((BH, S, S))),
        out_shape=(jax.ShapeDtypeStruct((BH, S, Dh), jnp.float32),
                   jax.ShapeDtypeStruct((BH, S, S), jnp.float32)),
        compiler_params=pltpu.CompilerParams(
            dimension_semantics=("arbitrary",)),
    )(qf, kf, vf, mf)

    return ctx.reshape(B, H, S, Dh), prob.reshape(B, H, S, S)


# ----------------------------- reference (pure JAX) ---------------------------
def reference_sdpa(Q, K, V, attn_mask, cfg):
    scale = 1.0 / (cfg.d_hidn ** 0.5)
    scores = jnp.einsum("bhqd,bhkd->bhqk", Q, K) * scale
    scores = jnp.where(attn_mask, jnp.float32(-1e9), scores)
    prob = jax.nn.softmax(scores, axis=-1)
    ctx = jnp.einsum("bhqk,bhkd->bhqd", prob, V)
    return ctx, prob


# ----------------------------- main -------------------------------------------
if __name__ == "__main__":
    cfg = Config()
    B, H, S, Dh = 2, cfg.n_head, cfg.n_enc_seq, cfg.d_head

    key = jax.random.PRNGKey(0)
    kq, kk, kv = jax.random.split(key, 3)
    Q = jax.random.normal(kq, (B, H, S, Dh), jnp.float32)
    K = jax.random.normal(kk, (B, H, S, Dh), jnp.float32)
    V = jax.random.normal(kv, (B, H, S, Dh), jnp.float32)

    # Pad mask exactly as BERT builds it: key positions that are pad tokens are
    # masked for every query row; batch 1 has its last two positions padded.
    key_is_pad = jnp.zeros((B, S), jnp.bool_).at[1, -2:].set(True)
    attn_mask = jnp.broadcast_to(key_is_pad[:, None, None, :], (B, H, S, S))

    context, attn_prob = scaled_dot_product_attention(Q, K, V, attn_mask, cfg)
    jax.block_until_ready(context)
    jax.block_until_ready(attn_prob)

    ref_ctx, ref_prob = reference_sdpa(Q, K, V, attn_mask, cfg)

    assert context.shape == (B, H, S, Dh)
    assert attn_prob.shape == (B, H, S, S)
    assert jnp.allclose(jnp.sum(attn_prob, axis=-1), 1.0, atol=5e-3)
    assert jnp.allclose(attn_prob, ref_prob, atol=5e-3, rtol=5e-3)
    assert jnp.allclose(context, ref_ctx, atol=5e-3, rtol=5e-3)
    # masked key columns get ~zero probability
    assert float(jnp.max(attn_prob[1, :, :, -2:])) < 1e-6

    print("KERNEL_OK")
</pallas_src>

<mosaic_0001>
module attributes {stable_mosaic.version = 11 : i64} {
  func.func @sdpa_kernel(%arg0: i32, %arg1: memref<8x8x8xf32, #tpu.memory_space<vmem>>, %arg2: memref<8x8x8xf32, #tpu.memory_space<vmem>>, %arg3: memref<8x8x8xf32, #tpu.memory_space<vmem>>, %arg4: memref<8x8x8xi32, #tpu.memory_space<vmem>>, %arg5: memref<8x8x8xf32, #tpu.memory_space<vmem>>, %arg6: memref<8x8x8xf32, #tpu.memory_space<vmem>>) attributes {dimension_semantics = [#tpu.dimension_semantics<arbitrary>], iteration_bounds = array<i64: 1>, scalar_prefetch = 0 : i64, scratch_operands = 0 : i64, tpu.core_type = #tpu.core_type<tc>, window_params = [{pipeline_mode = #tpu.pipeline_mode<synchronous>, transform_indices = @transform_0, window_bounds = array<i64: 8, 8, 8>}, {pipeline_mode = #tpu.pipeline_mode<synchronous>, transform_indices = @transform_1, window_bounds = array<i64: 8, 8, 8>}, {pipeline_mode = #tpu.pipeline_mode<synchronous>, transform_indices = @transform_2, window_bounds = array<i64: 8, 8, 8>}, {pipeline_mode = #tpu.pipeline_mode<synchronous>, transform_indices = @transform_3, window_bounds = array<i64: 8, 8, 8>}, {pipeline_mode = #tpu.pipeline_mode<synchronous>, transform_indices = @transform_4, window_bounds = array<i64: 8, 8, 8>}, {pipeline_mode = #tpu.pipeline_mode<synchronous>, transform_indices = @transform_5, window_bounds = array<i64: 8, 8, 8>}]} {
    %c0 = arith.constant 0 : index
    %c0_0 = arith.constant 0 : index
    %c0_1 = arith.constant 0 : index
    %0 = vector.load %arg1[%c0, %c0_0, %c0_1] : memref<8x8x8xf32, #tpu.memory_space<vmem>>, vector<8x8x8xf32>
    %cst = arith.constant 0.176776692 : f32
    %1 = vector.broadcast %cst : f32 to vector<8x8x8xf32>
    %2 = arith.mulf %0, %1 : vector<8x8x8xf32>
    %c0_2 = arith.constant 0 : index
    %c0_3 = arith.constant 0 : index
    %c0_4 = arith.constant 0 : index
    %3 = vector.load %arg2[%c0_2, %c0_3, %c0_4] : memref<8x8x8xf32, #tpu.memory_space<vmem>>, vector<8x8x8xf32>
    %c0_5 = arith.constant 0 : index
    %c0_6 = arith.constant 0 : index
    %c0_7 = arith.constant 0 : index
    %4 = vector.load %arg3[%c0_5, %c0_6, %c0_7] : memref<8x8x8xf32, #tpu.memory_space<vmem>>, vector<8x8x8xf32>
    %c0_8 = arith.constant 0 : index
    %c0_9 = arith.constant 0 : index
    %c0_10 = arith.constant 0 : index
    %5 = vector.load %arg4[%c0_8, %c0_9, %c0_10] : memref<8x8x8xi32, #tpu.memory_space<vmem>>, vector<8x8x8xi32>
    %c0_i32 = arith.constant 0 : i32
    %6 = vector.broadcast %c0_i32 : i32 to vector<8x8x8xi32>
    %7 = arith.cmpi ne, %5, %6 : vector<8x8x8xi32>
    "tpu.trace_start"() <{level = 10 : i32, message = "bqd,bkd->bqk"}> : () -> ()
    %cst_11 = arith.constant dense<0.000000e+00> : vector<8x8x8xf32>
    %8 = tpu.matmul %2, %3, %cst_11 {dimension_numbers = #tpu.dot_dimension_numbers<[2], [2], [1], [1], [0, 0, 0, 1, 1, 1], [0], [0]>} : vector<8x8x8xf32>, vector<8x8x8xf32>, vector<8x8x8xf32> -> vector<8x8x8xf32>
    %cst_12 = arith.constant -1.000000e+09 : f32
    "tpu.trace_stop"() : () -> ()
    %9 = vector.broadcast %cst_12 : f32 to vector<8x8x8xf32>
    %10 = arith.select %7, %9, %8 : vector<8x8x8xi1>, vector<8x8x8xf32>
    %cst_13 = arith.constant dense<0xFF800000> : vector<8x8xf32>
    %11 = vector.multi_reduction <maximumf>, %10, %cst_13 [2] : vector<8x8x8xf32> to vector<8x8xf32>
    %12 = vector.shape_cast %11 : vector<8x8xf32> to vector<8x8x1xf32>
    %13 = vector.broadcast %12 : vector<8x8x1xf32> to vector<8x8x8xf32>
    %14 = arith.subf %10, %13 : vector<8x8x8xf32>
    %15 = math.exp %14 : vector<8x8x8xf32>
    %cst_14 = arith.constant dense<0.000000e+00> : vector<8x8xf32>
    %16 = vector.multi_reduction <add>, %15, %cst_14 [2] : vector<8x8x8xf32> to vector<8x8xf32>
    %17 = vector.shape_cast %16 : vector<8x8xf32> to vector<8x8x1xf32>
    %18 = tpu.reciprocal %17 {approx = true} : vector<8x8x1xf32> -> vector<8x8x1xf32>
    %19 = vector.broadcast %18 : vector<8x8x1xf32> to vector<8x8x8xf32>
    %20 = arith.mulf %15, %19 : vector<8x8x8xf32>
    %c0_15 = arith.constant 0 : index
    %c0_16 = arith.constant 0 : index
    %c0_17 = arith.constant 0 : index
    %21 = vector.load %arg6[%c0_15, %c0_16, %c0_17] : memref<8x8x8xf32, #tpu.memory_space<vmem>>, vector<8x8x8xf32>
    tpu.vector_store %arg6[%c0_15, %c0_16, %c0_17], %20 {strides = array<i32>} : memref<8x8x8xf32, #tpu.memory_space<vmem>>, vector<8x8x8xf32>,
    "tpu.trace_start"() <{level = 10 : i32, message = "bqk,bkd->bqd"}> : () -> ()
    %cst_18 = arith.constant dense<0.000000e+00> : vector<8x8x8xf32>
    %22 = tpu.matmul %20, %4, %cst_18 {dimension_numbers = #tpu.dot_dimension_numbers<[2], [1], [1], [2], [0, 0, 0, 1, 1, 2], [0], [0]>} : vector<8x8x8xf32>, vector<8x8x8xf32>, vector<8x8x8xf32> -> vector<8x8x8xf32>
    "tpu.trace_stop"() : () -> ()
    %c0_19 = arith.constant 0 : index
    %c0_20 = arith.constant 0 : index
    %c0_21 = arith.constant 0 : index
    %23 = vector.load %arg5[%c0_19, %c0_20, %c0_21] : memref<8x8x8xf32, #tpu.memory_space<vmem>>, vector<8x8x8xf32>
    tpu.vector_store %arg5[%c0_19, %c0_20, %c0_21], %22 {strides = array<i32>} : memref<8x8x8xf32, #tpu.memory_space<vmem>>, vector<8x8x8xf32>,
    return
  }
  func.func @transform_0(%arg0: i32) -> (i32, i32, i32) {
    %c0_i32 = arith.constant 0 : i32
    %c0_i32_0 = arith.constant 0 : i32
    %c0_i32_1 = arith.constant 0 : i32
    %c0_i32_2 = arith.constant 0 : i32
    return %c0_i32, %c0_i32_0, %c0_i32_1 : i32, i32, i32
  }
  func.func @transform_1(%arg0: i32) -> (i32, i32, i32) {
    %c0_i32 = arith.constant 0 : i32
    %c0_i32_0 = arith.constant 0 : i32
    %c0_i32_1 = arith.constant 0 : i32
    %c0_i32_2 = arith.constant 0 : i32
    return %c0_i32, %c0_i32_0, %c0_i32_1 : i32, i32, i32
  }
  func.func @transform_2(%arg0: i32) -> (i32, i32, i32) {
    %c0_i32 = arith.constant 0 : i32
    %c0_i32_0 = arith.constant 0 : i32
    %c0_i32_1 = arith.constant 0 : i32
    %c0_i32_2 = arith.constant 0 : i32
    return %c0_i32, %c0_i32_0, %c0_i32_1 : i32, i32, i32
  }
  func.func @transform_3(%arg0: i32) -> (i32, i32, i32) {
    %c0_i32 = arith.constant 0 : i32
    %c0_i32_0 = arith.constant 0 : i32
    %c0_i32_1 = arith.constant 0 : i32
    %c0_i32_2 = arith.constant 0 : i32
    return %c0_i32, %c0_i32_0, %c0_i32_1 : i32, i32, i32
  }
  func.func @transform_4(%arg0: i32) -> (i32, i32, i32) {
    %c0_i32 = arith.constant 0 : i32
    %c0_i32_0 = arith.constant 0 : i32
    %c0_i32_1 = arith.constant 0 : i32
    %c0_i32_2 = arith.constant 0 : i32
    return %c0_i32, %c0_i32_0, %c0_i32_1 : i32, i32, i32
  }
  func.func @transform_5(%arg0: i32) -> (i32, i32, i32) {
    %c0_i32 = arith.constant 0 : i32
    %c0_i32_0 = arith.constant 0 : i32
    %c0_i32_1 = arith.constant 0 : i32
    %c0_i32_2 = arith.constant 0 : i32
    return %c0_i32, %c0_i32_0, %c0_i32_1 : i32, i32, i32
  }
}

</mosaic_0001>

<llo_original>
// kernel: tpu_custom_call.1
$region0: #{tpu_custom_call.1}
  #allocation0 [shape = 'u32[]', space=smem, size = 0x4, offset = 0x4, fixed_abs, tag = 'smem constant byte address 0x4 - core index']
  #allocation1 [shape = 'u32[72,128]{1,0:T(1,128)}', space=vmem, size = 0x9000, scoped, tag = 'internal scratch']
  %s0 = inlined_call_operand.hbm [shape: f32[8,8,8], index: 0, kind: input, shape index: {}]
  %s1 = inlined_call_operand.hbm [shape: f32[8,8,8], index: 1, kind: input, shape index: {}]
  %s2 = inlined_call_operand.hbm [shape: f32[8,8,8], index: 2, kind: input, shape index: {}]
  %s3 = inlined_call_operand.hbm [shape: s32[8,8,8], index: 3, kind: input, shape index: {}]
  %s4 = inlined_call_operand.hbm [shape: f32[8,8,8], index: 4, kind: output, shape index: {0}]
  %s5 = inlined_call_operand.hbm [shape: f32[8,8,8], index: 5, kind: output, shape index: {1}]
  %6 = xla_tuple %s4, %s5
  %s7 = sld [smem:[#allocation0]]
  $region50: #{tpu_custom_call.1} parent=0
    _
  %s9 = ssub.s32 1, %s7
  %s10 = scalar_select 0, %s9, %s7
  $region1: #{tpu_custom_call.1} parent=0
    #allocation2 [shape = 'u8[32768]{0}', space=vmem, size = 0x8000, scoped, tag = 'input window, operand 0, single buffered']
    #allocation3 [shape = 's32[1]{0}', space=sflag, size = 0x4, scoped, tag = 'scoped memory for tpu_custom_call.1']
    #allocation4 [shape = 's32[1]{0}', space=sflag, size = 0x4, scoped, tag = 'scoped memory for tpu_custom_call.1']
    #allocation5 [shape = 'u8[32768]{0}', space=vmem, size = 0x8000, scoped, tag = 'input window, operand 1, single buffered']
    #allocation6 [shape = 's32[1]{0}', space=sflag, size = 0x4, scoped, tag = 'scoped memory for tpu_custom_call.1']
    #allocation7 [shape = 'u8[32768]{0}', space=vmem, size = 0x8000, scoped, tag = 'input window, operand 2, single buffered']
    #allocation8 [shape = 'u8[32768]{0}', space=vmem, size = 0x8000, scoped, tag = 'input window, operand 3, single buffered']
    #allocation9 [shape = 's32[1]{0}', space=sflag, size = 0x4, scoped, tag = 'scoped memory for tpu_custom_call.1']
    #allocation10 [shape = 'u8[32768]{0}', space=vmem, size = 0x8000, scoped, tag = 'output window, operand 0, single buffered']
    #allocation11 [shape = 'u8[32768]{0}', space=vmem, size = 0x8000, scoped, tag = 'output window, operand 1, single buffered']
    #allocation12 [shape = 's32[1]{0}', space=sflag, size = 0x4, scoped, tag = 'scoped memory for tpu_custom_call.1']
    %11 = vsyncpa [#allocation3], 0
    %12 = vsyncpa [#allocation6], 0
    %13 = vsyncpa [#allocation9], 0
    %14 = vsyncpa [#allocation4], 0
    %15 = vsyncpa [#allocation12], 0
    // Predicated region
    $region2: #{tpu_custom_call.1} parent=1 // pred_check
      _
    $region3: #{tpu_custom_call.1} parent=1 // pred_check_branch
      %17 = sbr.rel (0) target = $region5
    $region4: #{tpu_custom_call.1} parent=1 // pred_region
      %19 = vsyncadd [#allocation3], 0
      %s20 = sshll.u32 %s0, 4
      %s21 = int_to_ptr.hbm [resolvable:$true] %s20
      %s22 = sshll.u32 [#allocation2], 4
      %s23 = int_to_ptr.vmem [resolvable:$true] %s22
      %28 = dma.hbm_to_vmem [thread:$0]  %s21, 1024, %s23, [#allocation3], 128, 128, 8
    $region5: #{tpu_custom_call.1} parent=1 // pred_fallthru
      _
    // Predicated region
    $region6: #{tpu_custom_call.1} parent=1 // pred_check
      _
    $region7: #{tpu_custom_call.1} parent=1 // pred_check_branch
      %30 = sbr.rel (0) target = $region9
    $region8: #{tpu_custom_call.1} parent=1 // pred_region
      %32 = vsyncadd [#allocation6], 0
      %s33 = sshll.u32 %s1, 4
      %s34 = int_to_ptr.hbm [resolvable:$true] %s33
      %s35 = sshll.u32 [#allocation5], 4
      %s36 = int_to_ptr.vmem [resolvable:$true] %s35
      %41 = dma.hbm_to_vmem [thread:$0]  %s34, 1024, %s36, [#allocation6], 128, 128, 8
    $region9: #{tpu_custom_call.1} parent=1 // pred_fallthru
      _
    // Predicated region
    $region10: #{tpu_custom_call.1} parent=1 // pred_check
      _
    $region11: #{tpu_custom_call.1} parent=1 // pred_check_branch
      %43 = sbr.rel (0) target = $region13
    $region12: #{tpu_custom_call.1} parent=1 // pred_region
      %45 = vsyncadd [#allocation6], 0
      %s46 = sshll.u32 %s2, 4
      %s47 = int_to_ptr.hbm [resolvable:$true] %s46
      %s48 = sshll.u32 [#allocation7], 4
      %s49 = int_to_ptr.vmem [resolvable:$true] %s48
      %54 = dma.hbm_to_vmem [thread:$0]  %s47, 1024, %s49, [#allocation6], 128, 128, 8
    $region13: #{tpu_custom_call.1} parent=1 // pred_fallthru
      _
    // Predicated region
    $region14: #{tpu_custom_call.1} parent=1 // pred_check
      _
    $region15: #{tpu_custom_call.1} parent=1 // pred_check_branch
      %56 = sbr.rel (0) target = $region17
    $region16: #{tpu_custom_call.1} parent=1 // pred_region
      %58 = vsyncadd [#allocation9], 0
      %s59 = sshll.u32 %s3, 4
      %s60 = int_to_ptr.hbm [resolvable:$true] %s59
      %s61 = sshll.u32 [#allocation8], 4
      %s62 = int_to_ptr.vmem [resolvable:$true] %s61
      %67 = dma.hbm_to_vmem [thread:$0]  %s60, 1024, %s62, [#allocation9], 128, 128, 8
    $region17: #{tpu_custom_call.1} parent=1 // pred_fallthru
      _
    // Predicated region
    $region18: #{tpu_custom_call.1} parent=1 // pred_check
      _
    $region19: #{tpu_custom_call.1} parent=1 // pred_check_branch
      %69 = sbr.rel (0) target = $region21
    $region20: #{tpu_custom_call.1} parent=1 // pred_region
      %71 = dma.done [#allocation3], 1024
    $region21: #{tpu_custom_call.1} parent=1 // pred_fallthru
      _
    // Predicated region
    $region22: #{tpu_custom_call.1} parent=1 // pred_check
      _
    $region23: #{tpu_custom_call.1} parent=1 // pred_check_branch
      %73 = sbr.rel (0) target = $region25
    $region24: #{tpu_custom_call.1} parent=1 // pred_region
      %75 = dma.done [#allocation6], 1024
    $region25: #{tpu_custom_call.1} parent=1 // pred_fallthru
      _
    // Predicated region
    $region26: #{tpu_custom_call.1} parent=1 // pred_check
      _
    $region27: #{tpu_custom_call.1} parent=1 // pred_check_branch
      %77 = sbr.rel (0) target = $region29
    $region28: #{tpu_custom_call.1} parent=1 // pred_region
      %79 = dma.done [#allocation6], 1024
    $region29: #{tpu_custom_call.1} parent=1 // pred_fallthru
      _
    // Predicated region
    $region30: #{tpu_custom_call.1} parent=1 // pred_check
      _
    $region31: #{tpu_custom_call.1} parent=1 // pred_check_branch
      %81 = sbr.rel (0) target = $region33
    $region32: #{tpu_custom_call.1} parent=1 // pred_region
      %83 = dma.done [#allocation9], 1024
    $region33: #{tpu_custom_call.1} parent=1 // pred_fallthru
      _
    %v84 = vld [vmem:[#allocation2] sm:$0xff]
    %v85 = vld [vmem:[#allocation2 + $0x8] sm:$0xff]
    %v86 = vld [vmem:[#allocation2 + $0x10] sm:$0xff]
    %v87 = vld [vmem:[#allocation2 + $0x18] sm:$0xff]
    %v88 = vld [vmem:[#allocation2 + $0x20] sm:$0xff]
    %v89 = vld [vmem:[#allocation2 + $0x28] sm:$0xff]
    %v90 = vld [vmem:[#allocation2 + $0x30] sm:$0xff]
    %v91 = vld [vmem:[#allocation2 + $0x38] sm:$0xff]
    %v92 = vmul.f32 %v84, 0.17677669
    %v93 = vmul.f32 %v85, 0.17677669
    %v94 = vmul.f32 %v86, 0.17677669
    %v95 = vmul.f32 %v87, 0.17677669
    %v96 = vmul.f32 %v88, 0.17677669
    %v97 = vmul.f32 %v89, 0.17677669
    %v98 = vmul.f32 %v90, 0.17677669
    %v99 = vmul.f32 %v91, 0.17677669
    %v100 = vld [vmem:[#allocation5] sm:$0xff]
    %v101 = vld [vmem:[#allocation5 + $0x8] sm:$0xff]
    %v102 = vld [vmem:[#allocation5 + $0x10] sm:$0xff]
    %v103 = vld [vmem:[#allocation5 + $0x18] sm:$0xff]
    %v104 = vld [vmem:[#allocation5 + $0x20] sm:$0xff]
    %v105 = vld [vmem:[#allocation5 + $0x28] sm:$0xff]
    %v106 = vld [vmem:[#allocation5 + $0x30] sm:$0xff]
    %v107 = vld [vmem:[#allocation5 + $0x38] sm:$0xff]
    %v108 = vld [vmem:[#allocation7] sm:$0xff]
    %v109 = vld [vmem:[#allocation7 + $0x8] sm:$0xff]
    %v110 = vld [vmem:[#allocation7 + $0x10] sm:$0xff]
    %v111 = vld [vmem:[#allocation7 + $0x18] sm:$0xff]
    %v112 = vld [vmem:[#allocation7 + $0x20] sm:$0xff]
    %v113 = vld [vmem:[#allocation7 + $0x28] sm:$0xff]
    %v114 = vld [vmem:[#allocation7 + $0x30] sm:$0xff]
    %v115 = vld [vmem:[#allocation7 + $0x38] sm:$0xff]
    %v116 = vld [vmem:[#allocation8] sm:$0xff]
    %v117 = vld [vmem:[#allocation8 + $0x8] sm:$0xff]
    %v118 = vld [vmem:[#allocation8 + $0x10] sm:$0xff]
    %v119 = vld [vmem:[#allocation8 + $0x18] sm:$0xff]
    %v120 = vld [vmem:[#allocation8 + $0x20] sm:$0xff]
    %v121 = vld [vmem:[#allocation8 + $0x28] sm:$0xff]
    %v122 = vld [vmem:[#allocation8 + $0x30] sm:$0xff]
    %v123 = vld [vmem:[#allocation8 + $0x38] sm:$0xff]
    %vm124 = vcmp.ne.s32.totalorder %v116, 0
    %vm125 = vcmp.ne.s32.totalorder %v117, 0
    %vm126 = vcmp.ne.s32.totalorder %v118, 0
    %vm127 = vcmp.ne.s32.totalorder %v119, 0
    %vm128 = vcmp.ne.s32.totalorder %v120, 0
    %vm129 = vcmp.ne.s32.totalorder %v121, 0
    %vm130 = vcmp.ne.s32.totalorder %v122, 0
    %vm131 = vcmp.ne.s32.totalorder %v123, 0
    %vm132 = vcmask 64512
    %v134 = vsel %vm132, %v92, 0
    %v137 = vsel %vm132, %v100, 0
    %139 = vmatpush.xpose.msra.mxu0 0.0
    %140 = vmatpush.xpose.msra.mxu0 0.0
    %141 = vmatpush.xpose.msra.mxu0 0.0
    %142 = vmatpush.xpose.msra.mxu0 0.0
    %143 = vmatpush.xpose.msra.mxu0 0.0
    %144 = vmatpush.xpose.msra.mxu0 0.0
    %145 = vmatpush.xpose.msra.mxu0 0.0
    %146 = vmatpush.xpose.msra.mxu0 0.0
    %147 = vmatpush.xpose.msra.mxu0 0.0
    %148 = vmatpush.xpose.msra.mxu0 0.0
    %149 = vmatpush.xpose.msra.mxu0 0.0
    %150 = vmatpush.xpose.msra.mxu0 0.0
    %151 = vmatpush.xpose.msra.mxu0 0.0
    %152 = vmatpush.xpose.msra.mxu0 0.0
    %153 = vmatpush.xpose.msra.mxu0 0.0
    %154 = vmatpush.xpose.msra.mxu0 %v137
    %155 = vmatmul.f32.gmra.mxu0 %v134
    %v156 = vpop.f32.mrf.mxu0
    %v157 = vadd.f32 0.0, %v156
    %158 = vdwg.mxu0
    %v160 = vsel %vm132, %v93, 0
    %v163 = vsel %vm132, %v101, 0
    %165 = vmatpush.xpose.msra.mxu0 0.0
    %166 = vmatpush.xpose.msra.mxu0 0.0
    %167 = vmatpush.xpose.msra.mxu0 0.0
    %168 = vmatpush.xpose.msra.mxu0 0.0
    %169 = vmatpush.xpose.msra.mxu0 0.0
    %170 = vmatpush.xpose.msra.mxu0 0.0
    %171 = vmatpush.xpose.msra.mxu0 0.0
    %172 = vmatpush.xpose.msra.mxu0 0.0
    %173 = vmatpush.xpose.msra.mxu0 0.0
    %174 = vmatpush.xpose.msra.mxu0 0.0
    %175 = vmatpush.xpose.msra.mxu0 0.0
    %176 = vmatpush.xpose.msra.mxu0 0.0
    %177 = vmatpush.xpose.msra.mxu0 0.0
    %178 = vmatpush.xpose.msra.mxu0 0.0
    %179 = vmatpush.xpose.msra.mxu0 0.0
    %180 = vmatpush.xpose.msra.mxu0 %v163
    %181 = vmatmul.f32.gmra.mxu0 %v160
    %v182 = vpop.f32.mrf.mxu0
    %v183 = vadd.f32 0.0, %v182
    %184 = vdwg.mxu0
    %v186 = vsel %vm132, %v94, 0
    %v189 = vsel %vm132, %v102, 0
    %191 = vmatpush.xpose.msra.mxu0 0.0
    %192 = vmatpush.xpose.msra.mxu0 0.0
    %193 = vmatpush.xpose.msra.mxu0 0.0
    %194 = vmatpush.xpose.msra.mxu0 0.0
    %195 = vmatpush.xpose.msra.mxu0 0.0
    %196 = vmatpush.xpose.msra.mxu0 0.0
    %197 = vmatpush.xpose.msra.mxu0 0.0
    %198 = vmatpush.xpose.msra.mxu0 0.0
    %199 = vmatpush.xpose.msra.mxu0 0.0
    %200 = vmatpush.xpose.msra.mxu0 0.0
    %201 = vmatpush.xpose.msra.mxu0 0.0
    %202 = vmatpush.xpose.msra.mxu0 0.0
    %203 = vmatpush.xpose.msra.mxu0 0.0
    %204 = vmatpush.xpose.msra.mxu0 0.0
    %205 = vmatpush.xpose.msra.mxu0 0.0
    %206 = vmatpush.xpose.msra.mxu0 %v189
    %207 = vmatmul.f32.gmra.mxu0 %v186
    %v208 = vpop.f32.mrf.mxu0
    %v209 = vadd.f32 0.0, %v208
    %210 = vdwg.mxu0
    %v212 = vsel %vm132, %v95, 0
    %v215 = vsel %vm132, %v103, 0
    %217 = vmatpush.xpose.msra.mxu0 0.0
    %218 = vmatpush.xpose.msra.mxu0 0.0
    %219 = vmatpush.xpose.msra.mxu0 0.0
    %220 = vmatpush.xpose.msra.mxu0 0.0
    %221 = vmatpush.xpose.msra.mxu0 0.0
    %222 = vmatpush.xpose.msra.mxu0 0.0
    %223 = vmatpush.xpose.msra.mxu0 0.0
    %224 = vmatpush.xpose.msra.mxu0 0.0
    %225 = vmatpush.xpose.msra.mxu0 0.0
    %226 = vmatpush.xpose.msra.mxu0 0.0
    %227 = vmatpush.xpose.msra.mxu0 0.0
    %228 = vmatpush.xpose.msra.mxu0 0.0
    %229 = vmatpush.xpose.msra.mxu0 0.0
    %230 = vmatpush.xpose.msra.mxu0 0.0
    %231 = vmatpush.xpose.msra.mxu0 0.0
    %232 = vmatpush.xpose.msra.mxu0 %v215
    %233 = vmatmul.f32.gmra.mxu0 %v212
    %v234 = vpop.f32.mrf.mxu0
    %v235 = vadd.f32 0.0, %v234
    %236 = vdwg.mxu0
    %v238 = vsel %vm132, %v96, 0
    %v241 = vsel %vm132, %v104, 0
    %243 = vmatpush.xpose.msra.mxu0 0.0
    %244 = vmatpush.xpose.msra.mxu0 0.0
    %245 = vmatpush.xpose.msra.mxu0 0.0
    %246 = vmatpush.xpose.msra.mxu0 0.0
    %247 = vmatpush.xpose.msra.mxu0 0.0
    %248 = vmatpush.xpose.msra.mxu0 0.0
    %249 = vmatpush.xpose.msra.mxu0 0.0
    %250 = vmatpush.xpose.msra.mxu0 0.0
    %251 = vmatpush.xpose.msra.mxu0 0.0
    %252 = vmatpush.xpose.msra.mxu0 0.0
    %253 = vmatpush.xpose.msra.mxu0 0.0
    %254 = vmatpush.xpose.msra.mxu0 0.0
    %255 = vmatpush.xpose.msra.mxu0 0.0
    %256 = vmatpush.xpose.msra.mxu0 0.0
    %257 = vmatpush.xpose.msra.mxu0 0.0
    %258 = vmatpush.xpose.msra.mxu0 %v241
    %259 = vmatmul.f32.gmra.mxu0 %v238
    %v260 = vpop.f32.mrf.mxu0
    %v261 = vadd.f32 0.0, %v260
    %262 = vdwg.mxu0
    %v264 = vsel %vm132, %v97, 0
    %v267 = vsel %vm132, %v105, 0
    %269 = vmatpush.xpose.msra.mxu0 0.0
    %270 = vmatpush.xpose.msra.mxu0 0.0
    %271 = vmatpush.xpose.msra.mxu0 0.0
    %272 = vmatpush.xpose.msra.mxu0 0.0
    %273 = vmatpush.xpose.msra.mxu0 0.0
    %274 = vmatpush.xpose.msra.mxu0 0.0
    %275 = vmatpush.xpose.msra.mxu0 0.0
    %276 = vmatpush.xpose.msra.mxu0 0.0
    %277 = vmatpush.xpose.msra.mxu0 0.0
    %278 = vmatpush.xpose.msra.mxu0 0.0
    %279 = vmatpush.xpose.msra.mxu0 0.0
    %280 = vmatpush.xpose.msra.mxu0 0.0
    %281 = vmatpush.xpose.msra.mxu0 0.0
    %282 = vmatpush.xpose.msra.mxu0 0.0
    %283 = vmatpush.xpose.msra.mxu0 0.0
    %284 = vmatpush.xpose.msra.mxu0 %v267
    %285 = vmatmul.f32.gmra.mxu0 %v264
    %v286 = vpop.f32.mrf.mxu0
    %v287 = vadd.f32 0.0, %v286
    %288 = vdwg.mxu0
    %v290 = vsel %vm132, %v98, 0
    %v293 = vsel %vm132, %v106, 0
    %295 = vmatpush.xpose.msra.mxu0 0.0
    %296 = vmatpush.xpose.msra.mxu0 0.0
    %297 = vmatpush.xpose.msra.mxu0 0.0
    %298 = vmatpush.xpose.msra.mxu0 0.0
    %299 = vmatpush.xpose.msra.mxu0 0.0
    %300 = vmatpush.xpose.msra.mxu0 0.0
    %301 = vmatpush.xpose.msra.mxu0 0.0
    %302 = vmatpush.xpose.msra.mxu0 0.0
    %303 = vmatpush.xpose.msra.mxu0 0.0
    %304 = vmatpush.xpose.msra.mxu0 0.0
    %305 = vmatpush.xpose.msra.mxu0 0.0
    %306 = vmatpush.xpose.msra.mxu0 0.0
    %307 = vmatpush.xpose.msra.mxu0 0.0
    %308 = vmatpush.xpose.msra.mxu0 0.0
    %309 = vmatpush.xpose.msra.mxu0 0.0
    %310 = vmatpush.xpose.msra.mxu0 %v293
    %311 = vmatmul.f32.gmra.mxu0 %v290
    %v312 = vpop.f32.mrf.mxu0
    %v313 = vadd.f32 0.0, %v312
    %314 = vdwg.mxu0
    %v316 = vsel %vm132, %v99, 0
    %v319 = vsel %vm132, %v107, 0
    %321 = vmatpush.xpose.msra.mxu0 0.0
    %322 = vmatpush.xpose.msra.mxu0 0.0
    %323 = vmatpush.xpose.msra.mxu0 0.0
    %324 = vmatpush.xpose.msra.mxu0 0.0
    %325 = vmatpush.xpose.msra.mxu0 0.0
    %326 = vmatpush.xpose.msra.mxu0 0.0
    %327 = vmatpush.xpose.msra.mxu0 0.0
    %328 = vmatpush.xpose.msra.mxu0 0.0
    %329 = vmatpush.xpose.msra.mxu0 0.0
    %330 = vmatpush.xpose.msra.mxu0 0.0
    %331 = vmatpush.xpose.msra.mxu0 0.0
    %332 = vmatpush.xpose.msra.mxu0 0.0
    %333 = vmatpush.xpose.msra.mxu0 0.0
    %334 = vmatpush.xpose.msra.mxu0 0.0
    %335 = vmatpush.xpose.msra.mxu0 0.0
    %336 = vmatpush.xpose.msra.mxu0 %v319
    %337 = vmatmul.f32.gmra.mxu0 %v316
    %v338 = vpop.f32.mrf.mxu0
    %v339 = vadd.f32 0.0, %v338
    %340 = vdwg.mxu0
    %v341 = vsel %vm124, -1e+09, %v157
    %v342 = vsel %vm125, -1e+09, %v183
    %v343 = vsel %vm126, -1e+09, %v209
    %v344 = vsel %vm127, -1e+09, %v235
    %v345 = vsel %vm128, -1e+09, %v261
    %v346 = vsel %vm129, -1e+09, %v287
    %v347 = vsel %vm130, -1e+09, %v313
    %v348 = vsel %vm131, -1e+09, %v339
    %v349 = vsel %vm132, %v341, -inf
    %350 = vmax.xlane.f32.xlu0 %v349
    %v351 = vpop.xlane.xlu0 %350
    %v352 = vsel %vm132, %v342, -inf
    %353 = vmax.xlane.f32.xlu0 %v352
    %v354 = vpop.xlane.xlu0 %353
    %v355 = vsel %vm132, %v343, -inf
    %356 = vmax.xlane.f32.xlu0 %v355
    %v357 = vpop.xlane.xlu0 %356
    %v358 = vsel %vm132, %v344, -inf
    %359 = vmax.xlane.f32.xlu0 %v358
    %v360 = vpop.xlane.xlu0 %359
    %v361 = vsel %vm132, %v345, -inf
    %362 = vmax.xlane.f32.xlu0 %v361
    %v363 = vpop.xlane.xlu0 %362
    %v364 = vsel %vm132, %v346, -inf
    %365 = vmax.xlane.f32.xlu0 %v364
    %v366 = vpop.xlane.xlu0 %365
    %v367 = vsel %vm132, %v347, -inf
    %368 = vmax.xlane.f32.xlu0 %v367
    %v369 = vpop.xlane.xlu0 %368
    %v370 = vsel %vm132, %v348, -inf
    %371 = vmax.xlane.f32.xlu0 %v370
    %v372 = vpop.xlane.xlu0 %371
    %v373 = vsub.f32 %v341, %v351
    %v374 = vsub.f32 %v342, %v354
    %v375 = vsub.f32 %v343, %v357
    %v376 = vsub.f32 %v344, %v360
    %v377 = vsub.f32 %v345, %v363
    %v378 = vsub.f32 %v346, %v366
    %v379 = vsub.f32 %v347, %v369
    %v380 = vsub.f32 %v348, %v372
    %v381 = vmul.f32 %v373, 1.442695
    %v382 = vpow.pop %v381
    %v383 = vmul.f32 %v374, 1.442695
    %v384 = vpow.pop %v383
    %v385 = vmul.f32 %v375, 1.442695
    %v386 = vpow.pop %v385
    %v387 = vmul.f32 %v376, 1.442695
    %v388 = vpow.pop %v387
    %v389 = vmul.f32 %v377, 1.442695
    %v390 = vpow.pop %v389
    %v391 = vmul.f32 %v378, 1.442695
    %v392 = vpow.pop %v391
    %v393 = vmul.f32 %v379, 1.442695
    %v394 = vpow.pop %v393
    %v395 = vmul.f32 %v380, 1.442695
    %v396 = vpow.pop %v395
    %v397 = vsel %vm132, %v382, 0.0
    %398 = vadd.xlane.f32.xlu0 %v397
    %v399 = vpop.xlane.xlu0 %398
    %v400 = vsel %vm132, %v384, 0.0
    %401 = vadd.xlane.f32.xlu0 %v400
    %v402 = vpop.xlane.xlu0 %401
    %v403 = vsel %vm132, %v386, 0.0
    %404 = vadd.xlane.f32.xlu0 %v403
    %v405 = vpop.xlane.xlu0 %404
    %v406 = vsel %vm132, %v388, 0.0
    %407 = vadd.xlane.f32.xlu0 %v406
    %v408 = vpop.xlane.xlu0 %407
    %v409 = vsel %vm132, %v390, 0.0
    %410 = vadd.xlane.f32.xlu0 %v409
    %v411 = vpop.xlane.xlu0 %410
    %v412 = vsel %vm132, %v392, 0.0
    %413 = vadd.xlane.f32.xlu0 %v412
    %v414 = vpop.xlane.xlu0 %413
    %v415 = vsel %vm132, %v394, 0.0
    %416 = vadd.xlane.f32.xlu0 %v415
    %v417 = vpop.xlane.xlu0 %416
    %v418 = vsel %vm132, %v396, 0.0
    %419 = vadd.xlane.f32.xlu0 %v418
    %v420 = vpop.xlane.xlu0 %419
    %v421 = vrcp.pop %v399
    %v422 = vrcp.pop %v402
    %v423 = vrcp.pop %v405
    %v424 = vrcp.pop %v408
    %v425 = vrcp.pop %v411
    %v426 = vrcp.pop %v414
    %v427 = vrcp.pop %v417
    %v428 = vrcp.pop %v420
    %v429 = vmul.f32 %v382, %v421
    %v430 = vmul.f32 %v384, %v422
    %v431 = vmul.f32 %v386, %v423
    %v432 = vmul.f32 %v388, %v424
    %v433 = vmul.f32 %v390, %v425
    %v434 = vmul.f32 %v392, %v426
    %v435 = vmul.f32 %v394, %v427
    %v436 = vmul.f32 %v396, %v428
    %437 = vst.msk [vmem:[#allocation11] sm:$0xff] %vm132, %v429
    %438 = vst.msk [vmem:[#allocation11 + $0x8] sm:$0xff] %vm132, %v430
    %439 = vst.msk [vmem:[#allocation11 + $0x10] sm:$0xff] %vm132, %v431
    %440 = vst.msk [vmem:[#allocation11 + $0x18] sm:$0xff] %vm132, %v432
    %441 = vst.msk [vmem:[#allocation11 + $0x20] sm:$0xff] %vm132, %v433
    %442 = vst.msk [vmem:[#allocation11 + $0x28] sm:$0xff] %vm132, %v434
    %443 = vst.msk [vmem:[#allocation11 + $0x30] sm:$0xff] %vm132, %v435
    %444 = vst.msk [vmem:[#allocation11 + $0x38] sm:$0xff] %vm132, %v436
    %v446 = vsel %vm132, %v429, 0
    %448 = vmatpush.msra.mxu0 0.0
    %449 = vmatpush.msra.mxu0 0.0
    %450 = vmatpush.msra.mxu0 0.0
    %451 = vmatpush.msra.mxu0 0.0
    %452 = vmatpush.msra.mxu0 0.0
    %453 = vmatpush.msra.mxu0 0.0
    %454 = vmatpush.msra.mxu0 0.0
    %455 = vmatpush.msra.mxu0 0.0
    %456 = vmatpush.msra.mxu0 0.0
    %457 = vmatpush.msra.mxu0 0.0
    %458 = vmatpush.msra.mxu0 0.0
    %459 = vmatpush.msra.mxu0 0.0
    %460 = vmatpush.msra.mxu0 0.0
    %461 = vmatpush.msra.mxu0 0.0
    %462 = vmatpush.msra.mxu0 0.0
    %463 = vmatpush.msra.mxu0 %v108
    %464 = vmatmul.f32.gmra.mxu0 %v446
    %v465 = vpop.f32.mrf.mxu0
    %v466 = vadd.f32 0.0, %v465
    %467 = vdwg.mxu0
    %v469 = vsel %vm132, %v430, 0
    %471 = vmatpush.msra.mxu0 0.0
    %472 = vmatpush.msra.mxu0 0.0
    %473 = vmatpush.msra.mxu0 0.0
    %474 = vmatpush.msra.mxu0 0.0
    %475 = vmatpush.msra.mxu0 0.0
    %476 = vmatpush.msra.mxu0 0.0
    %477 = vmatpush.msra.mxu0 0.0
    %478 = vmatpush.msra.mxu0 0.0
    %479 = vmatpush.msra.mxu0 0.0
    %480 = vmatpush.msra.mxu0 0.0
    %481 = vmatpush.msra.mxu0 0.0
    %482 = vmatpush.msra.mxu0 0.0
    %483 = vmatpush.msra.mxu0 0.0
    %484 = vmatpush.msra.mxu0 0.0
    %485 = vmatpush.msra.mxu0 0.0
    %486 = vmatpush.msra.mxu0 %v109
    %487 = vmatmul.f32.gmra.mxu0 %v469
    %v488 = vpop.f32.mrf.mxu0
    %v489 = vadd.f32 0.0, %v488
    %490 = vdwg.mxu0
    %v492 = vsel %vm132, %v431, 0
    %494 = vmatpush.msra.mxu0 0.0
    %495 = vmatpush.msra.mxu0 0.0
    %496 = vmatpush.msra.mxu0 0.0
    %497 = vmatpush.msra.mxu0 0.0
    %498 = vmatpush.msra.mxu0 0.0
    %499 = vmatpush.msra.mxu0 0.0
    %500 = vmatpush.msra.mxu0 0.0
    %501 = vmatpush.msra.mxu0 0.0
    %502 = vmatpush.msra.mxu0 0.0
    %503 = vmatpush.msra.mxu0 0.0
    %504 = vmatpush.msra.mxu0 0.0
    %505 = vmatpush.msra.mxu0 0.0
    %506 = vmatpush.msra.mxu0 0.0
    %507 = vmatpush.msra.mxu0 0.0
    %508 = vmatpush.msra.mxu0 0.0
    %509 = vmatpush.msra.mxu0 %v110
    %510 = vmatmul.f32.gmra.mxu0 %v492
    %v511 = vpop.f32.mrf.mxu0
    %v512 = vadd.f32 0.0, %v511
    %513 = vdwg.mxu0
    %v515 = vsel %vm132, %v432, 0
    %517 = vmatpush.msra.mxu0 0.0
    %518 = vmatpush.msra.mxu0 0.0
    %519 = vmatpush.msra.mxu0 0.0
    %520 = vmatpush.msra.mxu0 0.0
    %521 = vmatpush.msra.mxu0 0.0
    %522 = vmatpush.msra.mxu0 0.0
    %523 = vmatpush.msra.mxu0 0.0
    %524 = vmatpush.msra.mxu0 0.0
    %525 = vmatpush.msra.mxu0 0.0
    %526 = vmatpush.msra.mxu0 0.0
    %527 = vmatpush.msra.mxu0 0.0
    %528 = vmatpush.msra.mxu0 0.0
    %529 = vmatpush.msra.mxu0 0.0
    %530 = vmatpush.msra.mxu0 0.0
    %531 = vmatpush.msra.mxu0 0.0
    %532 = vmatpush.msra.mxu0 %v111
    %533 = vmatmul.f32.gmra.mxu0 %v515
    %v534 = vpop.f32.mrf.mxu0
    %v535 = vadd.f32 0.0, %v534
    %536 = vdwg.mxu0
    %v538 = vsel %vm132, %v433, 0
    %540 = vmatpush.msra.mxu0 0.0
    %541 = vmatpush.msra.mxu0 0.0
    %542 = vmatpush.msra.mxu0 0.0
    %543 = vmatpush.msra.mxu0 0.0
    %544 = vmatpush.msra.mxu0 0.0
    %545 = vmatpush.msra.mxu0 0.0
    %546 = vmatpush.msra.mxu0 0.0
    %547 = vmatpush.msra.mxu0 0.0
    %548 = vmatpush.msra.mxu0 0.0
    %549 = vmatpush.msra.mxu0 0.0
    %550 = vmatpush.msra.mxu0 0.0
    %551 = vmatpush.msra.mxu0 0.0
    %552 = vmatpush.msra.mxu0 0.0
    %553 = vmatpush.msra.mxu0 0.0
    %554 = vmatpush.msra.mxu0 0.0
    %555 = vmatpush.msra.mxu0 %v112
    %556 = vmatmul.f32.gmra.mxu0 %v538
    %v557 = vpop.f32.mrf.mxu0
    %v558 = vadd.f32 0.0, %v557
    %559 = vdwg.mxu0
    %v561 = vsel %vm132, %v434, 0
    %563 = vmatpush.msra.mxu0 0.0
    %564 = vmatpush.msra.mxu0 0.0
    %565 = vmatpush.msra.mxu0 0.0
    %566 = vmatpush.msra.mxu0 0.0
    %567 = vmatpush.msra.mxu0 0.0
    %568 = vmatpush.msra.mxu0 0.0
    %569 = vmatpush.msra.mxu0 0.0
    %570 = vmatpush.msra.mxu0 0.0
    %571 = vmatpush.msra.mxu0 0.0
    %572 = vmatpush.msra.mxu0 0.0
    %573 = vmatpush.msra.mxu0 0.0
    %574 = vmatpush.msra.mxu0 0.0
    %575 = vmatpush.msra.mxu0 0.0
    %576 = vmatpush.msra.mxu0 0.0
    %577 = vmatpush.msra.mxu0 0.0
    %578 = vmatpush.msra.mxu0 %v113
    %579 = vmatmul.f32.gmra.mxu0 %v561
    %v580 = vpop.f32.mrf.mxu0
    %v581 = vadd.f32 0.0, %v580
    %582 = vdwg.mxu0
    %v584 = vsel %vm132, %v435, 0
    %586 = vmatpush.msra.mxu0 0.0
    %587 = vmatpush.msra.mxu0 0.0
    %588 = vmatpush.msra.mxu0 0.0
    %589 = vmatpush.msra.mxu0 0.0
    %590 = vmatpush.msra.mxu0 0.0
    %591 = vmatpush.msra.mxu0 0.0
    %592 = vmatpush.msra.mxu0 0.0
    %593 = vmatpush.msra.mxu0 0.0
    %594 = vmatpush.msra.mxu0 0.0
    %595 = vmatpush.msra.mxu0 0.0
    %596 = vmatpush.msra.mxu0 0.0
    %597 = vmatpush.msra.mxu0 0.0
    %598 = vmatpush.msra.mxu0 0.0
    %599 = vmatpush.msra.mxu0 0.0
    %600 = vmatpush.msra.mxu0 0.0
    %601 = vmatpush.msra.mxu0 %v114
    %602 = vmatmul.f32.gmra.mxu0 %v584
    %v603 = vpop.f32.mrf.mxu0
    %v604 = vadd.f32 0.0, %v603
    %605 = vdwg.mxu0
    %v607 = vsel %vm132, %v436, 0
    %609 = vmatpush.msra.mxu0 0.0
    %610 = vmatpush.msra.mxu0 0.0
    %611 = vmatpush.msra.mxu0 0.0
    %612 = vmatpush.msra.mxu0 0.0
    %613 = vmatpush.msra.mxu0 0.0
    %614 = vmatpush.msra.mxu0 0.0
    %615 = vmatpush.msra.mxu0 0.0
    %616 = vmatpush.msra.mxu0 0.0
    %617 = vmatpush.msra.mxu0 0.0
    %618 = vmatpush.msra.mxu0 0.0
    %619 = vmatpush.msra.mxu0 0.0
    %620 = vmatpush.msra.mxu0 0.0
    %621 = vmatpush.msra.mxu0 0.0
    %622 = vmatpush.msra.mxu0 0.0
    %623 = vmatpush.msra.mxu0 0.0
    %624 = vmatpush.msra.mxu0 %v115
    %625 = vmatmul.f32.gmra.mxu0 %v607
    %v626 = vpop.f32.mrf.mxu0
    %v627 = vadd.f32 0.0, %v626
    %628 = vdwg.mxu0
    %629 = vst.msk [vmem:[#allocation10] sm:$0xff] %vm132, %v466
    %630 = vst.msk [vmem:[#allocation10 + $0x8] sm:$0xff] %vm132, %v489
    %631 = vst.msk [vmem:[#allocation10 + $0x10] sm:$0xff] %vm132, %v512
    %632 = vst.msk [vmem:[#allocation10 + $0x18] sm:$0xff] %vm132, %v535
    %633 = vst.msk [vmem:[#allocation10 + $0x20] sm:$0xff] %vm132, %v558
    %634 = vst.msk [vmem:[#allocation10 + $0x28] sm:$0xff] %vm132, %v581
    %635 = vst.msk [vmem:[#allocation10 + $0x30] sm:$0xff] %vm132, %v604
    %636 = vst.msk [vmem:[#allocation10 + $0x38] sm:$0xff] %vm132, %v627
    // Predicated region
    $region34: #{tpu_custom_call.1} parent=1 // pred_check
      _
    $region35: #{tpu_custom_call.1} parent=1 // pred_check_branch
      %638 = sbr.rel (0) target = $region37
    $region36: #{tpu_custom_call.1} parent=1 // pred_region
      %640 = vsyncadd [#allocation4], 0
      %s641 = sshll.u32 [#allocation10], 4
      %s642 = int_to_ptr.vmem [resolvable:$true] %s641
      %s643 = sshll.u32 %s4, 4
      %s644 = int_to_ptr.hbm [resolvable:$true] %s643
      %649 = dma.vmem_to_hbm [thread:$0]  %s642, 1024, %s644, [#allocation4], 128, 128, 8
    $region37: #{tpu_custom_call.1} parent=1 // pred_fallthru
      _
    // Predicated region
    $region38: #{tpu_custom_call.1} parent=1 // pred_check
      _
    $region39: #{tpu_custom_call.1} parent=1 // pred_check_branch
      %651 = sbr.rel (0) target = $region41
    $region40: #{tpu_custom_call.1} parent=1 // pred_region
      %653 = vsyncadd [#allocation12], 0
      %s654 = sshll.u32 [#allocation11], 4
      %s655 = int_to_ptr.vmem [resolvable:$true] %s654
      %s656 = sshll.u32 %s5, 4
      %s657 = int_to_ptr.hbm [resolvable:$true] %s656
      %662 = dma.vmem_to_hbm [thread:$0]  %s655, 1024, %s657, [#allocation12], 128, 128, 8
    $region41: #{tpu_custom_call.1} parent=1 // pred_fallthru
      _
    // Predicated region
    $region42: #{tpu_custom_call.1} parent=1 // pred_check
      _
    $region43: #{tpu_custom_call.1} parent=1 // pred_check_branch
      %664 = sbr.rel (0) target = $region45
    $region44: #{tpu_custom_call.1} parent=1 // pred_region
      %666 = dma.done [#allocation4], 1024
    $region45: #{tpu_custom_call.1} parent=1 // pred_fallthru
      _
    // Predicated region
    $region46: #{tpu_custom_call.1} parent=1 // pred_check
      _
    $region47: #{tpu_custom_call.1} parent=1 // pred_check_branch
      %668 = sbr.rel (0) target = $region49
    $region48: #{tpu_custom_call.1} parent=1 // pred_region
      %670 = dma.done [#allocation12], 1024
    $region49: #{tpu_custom_call.1} parent=1 // pred_fallthru
      _
    %671 = vsyncpa [#allocation3], 1
    %672 = vsyncpa [#allocation6], 1
    %673 = vsyncpa [#allocation9], 1
    %674 = vsyncpa [#allocation4], 1
    %675 = vsyncpa [#allocation12], 1

</llo_original>
